<compile_context>
chip_gen: v6e
topology: v6e:2x2x1
jax: 0.10.0
libtpu: 0.0.40
codegen_flags: <defaults>
</compile_context>

<pallas_src>
import jax
import jax.numpy as jnp
from jax.experimental import pallas as pl
from jax.experimental.pallas import tpu as pltpu


def _round_up(a, b):
    return ((a + b - 1) // b) * b


def _tpu_generation():
    try:
        kind = jax.devices()[0].device_kind.lower()
    except Exception:
        return "unknown"
    if "v5 lite" in kind or "v5e" in kind or "v5litepod" in kind:
        return "v5e"
    if "v6" in kind or "trillium" in kind:
        return "v6e"
    if "v7" in kind:
        return "v7x"
    return "unknown"


# Per-generation tiling / VMEM budgets (bytes).
_GEN_CONFIG = {
    "v5e": dict(tile_m=512, tile_h=1024, vmem_limit=100 * 1024 * 1024),
    "v6e": dict(tile_m=512, tile_h=1024, vmem_limit=100 * 1024 * 1024),
    "v7x": dict(tile_m=384, tile_h=512, vmem_limit=48 * 1024 * 1024),
    "unknown": dict(tile_m=256, tile_h=512, vmem_limit=64 * 1024 * 1024),
}


def _vmem_footprint(tile_m, tile_h, e_pad, in_bytes, out_bytes, use_acc):
    """Rough VMEM bytes for one grid step (double-buffered in/out tiles)."""
    x_tile = 2 * tile_m * e_pad * in_bytes
    w1_tile = 2 * e_pad * tile_h * in_bytes
    w2_tile = 2 * tile_h * e_pad * in_bytes
    b_tiles = 2 * (tile_h + e_pad) * 4
    o_tile = 2 * tile_m * e_pad * out_bytes
    acc = tile_m * e_pad * 4 if use_acc else 0
    hidden = tile_m * tile_h * 4  # transient f32 ReLU intermediate
    return x_tile + w1_tile + w2_tile + b_tiles + o_tile + acc + hidden


def _fit_tile_m(tile_m, tile_h, e_pad, in_bytes, out_bytes, vmem_limit,
                m_align, use_acc):
    budget = int(0.85 * vmem_limit)
    while (tile_m > m_align and
           _vmem_footprint(tile_m, tile_h, e_pad, in_bytes, out_bytes,
                           use_acc) > budget):
        tile_m = max(m_align, _round_up(tile_m // 2, m_align))
    return tile_m


def _ff_kernel(x_ref, w1_ref, b1_ref, w2_ref, b2_ref, o_ref, *scratch):
    # x_ref:  (TM, E_pad)   w1_ref: (E_pad, TH)   b1_ref: (1, TH)
    # w2_ref: (TH, E_pad)   b2_ref: (1, E_pad)    o_ref:  (TM, E_pad)
    # scratch: optional (TM, E_pad) f32 accumulator (only when out is not f32);
    # for f32 outputs we accumulate directly into o_ref (resident across h).
    acc_ref = scratch[0] if scratch else o_ref
    h_step = pl.program_id(1)
    n_h = pl.num_programs(1)

    # First matmul for this H chunk; f32 accumulation on the MXU.
    h = jnp.dot(x_ref[...], w1_ref[...], preferred_element_type=jnp.float32)
    h = jnp.maximum(h + b1_ref[...], 0.0)            # bias + ReLU in f32 (VPU)

    # Second matmul: this H chunk's contribution to the output.
    contrib = jnp.dot(h.astype(w2_ref.dtype), w2_ref[...],
                      preferred_element_type=jnp.float32)

    @pl.when(h_step == 0)
    def _():
        acc_ref[...] = contrib            # direct write: no zero-init + RMW

    @pl.when(h_step != 0)
    def _():
        acc_ref[...] += contrib

    @pl.when(h_step == n_h - 1)
    def _():
        o_ref[...] = (acc_ref[...] + b2_ref[...]).astype(o_ref.dtype)


def make_feed_forward(w1, b1, w2, b2, *, compute_dtype=None,
                      tile_m=None, tile_h=None, vmem_limit_bytes=None):
    """Torch layout: w1 (H, E), b1 (H,), w2 (E, H), b2 (E,).

    Returns a function x -> W2(relu(W1 x + b1)) + b2 with weights preprocessed
    (transposed, padded, cast) exactly once. compute_dtype sets the MXU input
    dtype (e.g. jnp.bfloat16 on v6e/v7x); accumulation and biases stay f32.
    """
    H, E = w1.shape
    assert w2.shape == (E, H) and b1.shape == (H,) and b2.shape == (E,)
    if compute_dtype is None:
        compute_dtype = jnp.asarray(w1).dtype
    compute_dtype = jnp.dtype(compute_dtype)

    cfg = dict(_GEN_CONFIG.get(_tpu_generation(), _GEN_CONFIG["unknown"]))
    if tile_m is not None:
        cfg["tile_m"] = tile_m
    if tile_h is not None:
        cfg["tile_h"] = tile_h
    if vmem_limit_bytes is not None:
        cfg["vmem_limit"] = vmem_limit_bytes

    in_bytes = compute_dtype.itemsize
    m_align = 16 if compute_dtype == jnp.dtype(jnp.bfloat16) else 8

    # Lane-dense / MXU-friendly padding of the feature dims.
    E_pad = _round_up(E, 128)
    H_full = _round_up(H, 128)

    # Keep weights resident (single H step, DMA'd exactly once) when their
    # double-buffered footprint is a small fraction of the VMEM budget.
    resident_weight_bytes = 2 * (2 * E_pad * H_full * in_bytes)
    if resident_weight_bytes <= 0.4 * cfg["vmem_limit"]:
        tile_h_eff = H_full
    else:
        tile_h_eff = min(cfg["tile_h"], H_full)
    H_pad = _round_up(H_full, tile_h_eff)

    # One-time weight preprocessing (hoisted out of the per-call path).
    # Zero padding keeps the math exact.
    w1t = jnp.pad(jnp.asarray(w1).T,
                  ((0, E_pad - E), (0, H_pad - H))).astype(compute_dtype)
    w2t = jnp.pad(jnp.asarray(w2).T,
                  ((0, H_pad - H), (0, E_pad - E))).astype(compute_dtype)
    b1r = jnp.pad(jnp.asarray(b1), (0, H_pad - H)).astype(jnp.float32)
    b1r = b1r.reshape(1, H_pad)
    b2r = jnp.pad(jnp.asarray(b2), (0, E_pad - E)).astype(jnp.float32)
    b2r = b2r.reshape(1, E_pad)

    @jax.jit
    def _apply(x, w1t, b1r, w2t, b2r):
        orig_shape = x.shape
        out_dtype = x.dtype
        assert orig_shape[-1] == E
        x2 = x.reshape(-1, E)
        M = x2.shape[0]

        out_bytes = jnp.dtype(out_dtype).itemsize
        use_acc = jnp.dtype(out_dtype) != jnp.dtype(jnp.float32)

        tm = min(cfg["tile_m"], _round_up(M, m_align))
        tm = _fit_tile_m(tm, tile_h_eff, E_pad, in_bytes, out_bytes,
                         cfg["vmem_limit"], m_align, use_acc)
        M_pad = _round_up(M, tm)

        x2p = jnp.pad(x2, ((0, M_pad - M), (0, E_pad - E))).astype(compute_dtype)

        n_m = M_pad // tm
        n_h = H_pad // tile_h_eff
        grid = (n_m, n_h)

        # Weights are fetched once when their block index is constant across
        # the whole grid (n_h == 1); otherwise once per M tile.
        weight_streams = 1 if n_h == 1 else n_m
        cost = pl.CostEstimate(
            flops=4 * M_pad * E_pad * H_pad,
            transcendentals=0,
            bytes_accessed=(M_pad * E_pad * in_bytes
                            + weight_streams * 2 * E_pad * H_pad * in_bytes
                            + (H_pad + E_pad) * 4
                            + M_pad * E_pad * out_bytes),
        )

        scratch = ([] if not use_acc
                   else [pltpu.VMEM((tm, E_pad), jnp.float32)])

        out = pl.pallas_call(
            _ff_kernel,
            out_shape=jax.ShapeDtypeStruct((M_pad, E_pad), out_dtype),
            grid_spec=pltpu.PrefetchScalarGridSpec(
                num_scalar_prefetch=0,
                grid=grid,
                in_specs=[
                    pl.BlockSpec((tm, E_pad), lambda i, h: (i, 0)),        # x
                    pl.BlockSpec((E_pad, tile_h_eff), lambda i, h: (0, h)),  # W1^T
                    pl.BlockSpec((1, tile_h_eff), lambda i, h: (0, h)),      # b1
                    pl.BlockSpec((tile_h_eff, E_pad), lambda i, h: (h, 0)),  # W2^T
                    pl.BlockSpec((1, E_pad), lambda i, h: (0, 0)),           # b2
                ],
                out_specs=pl.BlockSpec((tm, E_pad), lambda i, h: (i, 0)),
                scratch_shapes=scratch,
            ),
            compiler_params=pltpu.CompilerParams(
                dimension_semantics=("parallel", "arbitrary"),
                vmem_limit_bytes=cfg["vmem_limit"],
            ),
            cost_estimate=cost,
        )(x2p, w1t, b1r, w2t, b2r)

        return out[:M, :E].reshape(orig_shape)

    return lambda x: _apply(x, w1t, b1r, w2t, b2r)


def feed_forward(x, w1, b1, w2, b2, **kwargs):
    """One-shot convenience wrapper (prefer make_feed_forward for reuse)."""
    return make_feed_forward(w1, b1, w2, b2, **kwargs)(x)


def init_linear_params(key, in_dim, out_dim, dtype=jnp.float32):
    """Deterministic init mimicking torch.nn.Linear defaults."""
    kw, kb = jax.random.split(key)
    bound = 1.0 / (in_dim ** 0.5)
    w = jax.random.uniform(kw, (out_dim, in_dim), dtype, minval=-bound, maxval=bound)
    b = jax.random.uniform(kb, (out_dim,), dtype, minval=-bound, maxval=bound)
    return w, b


if __name__ == "__main__":
    embedding_dim = 32
    ff_hidden_dim = 64
    batch, seq = 2, 16   # M = 32 tokens (small demo; tile_m auto-caps to 32)

    key = jax.random.PRNGKey(0)
    k_x, k_w1, k_w2 = jax.random.split(key, 3)

    x = jax.random.normal(k_x, (batch, seq, embedding_dim), jnp.float32)
    w1, b1 = init_linear_params(k_w1, embedding_dim, ff_hidden_dim)
    w2, b2 = init_linear_params(k_w2, ff_hidden_dim, embedding_dim)

    # Pure-JAX reference of the same forward semantics.
    h_ref = jnp.maximum(x @ w1.T + b1, 0.0)
    y_ref = h_ref @ w2.T + b2

    # f32 MXU path (exact vs. reference).
    ff = make_feed_forward(w1, b1, w2, b2)          # weights prepped once
    y = jax.block_until_ready(ff(x))
    assert y.shape == x.shape
    assert jnp.allclose(y, y_ref, atol=1e-5, rtol=1e-5)

    # bf16 MXU path (recommended on v6e/v7x); f32 accumulation, looser tol.
    ff_bf16 = make_feed_forward(w1, b1, w2, b2, compute_dtype=jnp.bfloat16)
    y_bf16 = jax.block_until_ready(ff_bf16(x))
    assert y_bf16.shape == x.shape
    assert jnp.allclose(y_bf16, y_ref, atol=5e-2, rtol=5e-2)

    print("KERNEL_OK")
</pallas_src>

<mosaic_0001>
module attributes {stable_mosaic.version = 11 : i64} {
  func.func @_ff_kernel(%arg0: i32, %arg1: i32, %arg2: memref<32x128xf32, #tpu.memory_space<vmem>>, %arg3: memref<128x128xf32, #tpu.memory_space<vmem>>, %arg4: memref<1x128xf32, #tpu.memory_space<vmem>>, %arg5: memref<128x128xf32, #tpu.memory_space<vmem>>, %arg6: memref<1x128xf32, #tpu.memory_space<vmem>>, %arg7: memref<32x128xf32, #tpu.memory_space<vmem>>) attributes {dimension_semantics = [#tpu.dimension_semantics<parallel>, #tpu.dimension_semantics<arbitrary>], iteration_bounds = array<i64: 1, 1>, scalar_prefetch = 0 : i64, scratch_operands = 0 : i64, tpu.core_type = #tpu.core_type<tc>, window_params = [{transform_indices = @transform_0, window_bounds = array<i64: 32, 128>}, {transform_indices = @transform_1, window_bounds = array<i64: 128, 128>}, {transform_indices = @transform_2, window_bounds = array<i64: 1, 128>}, {transform_indices = @transform_3, window_bounds = array<i64: 128, 128>}, {pipeline_mode = #tpu.pipeline_mode<synchronous>, transform_indices = @transform_4, window_bounds = array<i64: 1, 128>}, {transform_indices = @transform_5, window_bounds = array<i64: 32, 128>}]} {
    %c0 = arith.constant 0 : index
    %c0_0 = arith.constant 0 : index
    %0 = vector.load %arg2[%c0, %c0_0] : memref<32x128xf32, #tpu.memory_space<vmem>>, vector<32x128xf32>
    %c0_1 = arith.constant 0 : index
    %c0_2 = arith.constant 0 : index
    %1 = vector.load %arg3[%c0_1, %c0_2] : memref<128x128xf32, #tpu.memory_space<vmem>>, vector<128x128xf32>
    %cst = arith.constant dense<0.000000e+00> : vector<32x128xf32>
    %2 = tpu.matmul %0, %1, %cst {dimension_numbers = #tpu.dot_dimension_numbers<[1], [0], [0], [1], [0, 0, 1, 1], [], []>} : vector<32x128xf32>, vector<128x128xf32>, vector<32x128xf32> -> vector<32x128xf32>
    %c0_3 = arith.constant 0 : index
    %c0_4 = arith.constant 0 : index
    %3 = vector.load %arg4[%c0_3, %c0_4] : memref<1x128xf32, #tpu.memory_space<vmem>>, vector<1x128xf32>
    %4 = vector.broadcast %3 : vector<1x128xf32> to vector<32x128xf32>
    %5 = arith.addf %2, %4 : vector<32x128xf32>
    %cst_5 = arith.constant 0.000000e+00 : f32
    %6 = vector.broadcast %cst_5 : f32 to vector<32x128xf32>
    %7 = arith.maximumf %5, %6 : vector<32x128xf32>
    %c0_6 = arith.constant 0 : index
    %c0_7 = arith.constant 0 : index
    %8 = vector.load %arg5[%c0_6, %c0_7] : memref<128x128xf32, #tpu.memory_space<vmem>>, vector<128x128xf32>
    %cst_8 = arith.constant dense<0.000000e+00> : vector<32x128xf32>
    %9 = tpu.matmul %7, %8, %cst_8 {dimension_numbers = #tpu.dot_dimension_numbers<[1], [0], [0], [1], [0, 0, 1, 1], [], []>} : vector<32x128xf32>, vector<128x128xf32>, vector<32x128xf32> -> vector<32x128xf32>
    %c0_i32 = arith.constant 0 : i32
    %10 = arith.cmpi eq, %arg1, %c0_i32 : i32
    %11 = arith.extui %10 : i1 to i32
    %c0_i32_9 = arith.constant 0 : i32
    %12 = arith.cmpi ne, %11, %c0_i32_9 : i32
    scf.if %12 {
      %c0_14 = arith.constant 0 : index
      %c0_15 = arith.constant 0 : index
      %19 = vector.load %arg7[%c0_14, %c0_15] : memref<32x128xf32, #tpu.memory_space<vmem>>, vector<32x128xf32>
      tpu.vector_store %arg7[%c0_14, %c0_15], %9 {strides = array<i32>} : memref<32x128xf32, #tpu.memory_space<vmem>>, vector<32x128xf32>,
    } else {
    }
    %c0_i32_10 = arith.constant 0 : i32
    %13 = arith.cmpi ne, %arg1, %c0_i32_10 : i32
    %14 = arith.extui %13 : i1 to i32
    %c0_i32_11 = arith.constant 0 : i32
    %15 = arith.cmpi ne, %14, %c0_i32_11 : i32
    scf.if %15 {
      %c0_14 = arith.constant 0 : index
      %c0_15 = arith.constant 0 : index
      %19 = vector.load %arg7[%c0_14, %c0_15] : memref<32x128xf32, #tpu.memory_space<vmem>>, vector<32x128xf32>
      %20 = arith.addf %19, %9 : vector<32x128xf32>
      %c0_16 = arith.constant 0 : index
      %c0_17 = arith.constant 0 : index
      %21 = vector.load %arg7[%c0_16, %c0_17] : memref<32x128xf32, #tpu.memory_space<vmem>>, vector<32x128xf32>
      tpu.vector_store %arg7[%c0_16, %c0_17], %20 {strides = array<i32>} : memref<32x128xf32, #tpu.memory_space<vmem>>, vector<32x128xf32>,
    } else {
    }
    %c0_i32_12 = arith.constant 0 : i32
    %16 = arith.cmpi eq, %arg1, %c0_i32_12 : i32
    %17 = arith.extui %16 : i1 to i32
    %c0_i32_13 = arith.constant 0 : i32
    %18 = arith.cmpi ne, %17, %c0_i32_13 : i32
    scf.if %18 {
      %c0_14 = arith.constant 0 : index
      %c0_15 = arith.constant 0 : index
      %19 = vector.load %arg7[%c0_14, %c0_15] : memref<32x128xf32, #tpu.memory_space<vmem>>, vector<32x128xf32>
      %c0_16 = arith.constant 0 : index
      %c0_17 = arith.constant 0 : index
      %20 = vector.load %arg6[%c0_16, %c0_17] : memref<1x128xf32, #tpu.memory_space<vmem>>, vector<1x128xf32>
      %21 = vector.broadcast %20 : vector<1x128xf32> to vector<32x128xf32>
      %22 = arith.addf %19, %21 : vector<32x128xf32>
      %c0_18 = arith.constant 0 : index
      %c0_19 = arith.constant 0 : index
      %23 = vector.load %arg7[%c0_18, %c0_19] : memref<32x128xf32, #tpu.memory_space<vmem>>, vector<32x128xf32>
      tpu.vector_store %arg7[%c0_18, %c0_19], %22 {strides = array<i32>} : memref<32x128xf32, #tpu.memory_space<vmem>>, vector<32x128xf32>,
    } else {
    }
    return
  }
  func.func @transform_0(%arg0: i32, %arg1: i32) -> (i32, i32) {
    %c0_i32 = arith.constant 0 : i32
    %c0_i32_0 = arith.constant 0 : i32
    return %arg0, %c0_i32 : i32, i32
  }
  func.func @transform_1(%arg0: i32, %arg1: i32) -> (i32, i32) {
    %c0_i32 = arith.constant 0 : i32
    %c0_i32_0 = arith.constant 0 : i32
    return %c0_i32, %arg1 : i32, i32
  }
  func.func @transform_2(%arg0: i32, %arg1: i32) -> (i32, i32) {
    %c0_i32 = arith.constant 0 : i32
    %c0_i32_0 = arith.constant 0 : i32
    return %c0_i32, %arg1 : i32, i32
  }
  func.func @transform_3(%arg0: i32, %arg1: i32) -> (i32, i32) {
    %c0_i32 = arith.constant 0 : i32
    %c0_i32_0 = arith.constant 0 : i32
    return %arg1, %c0_i32 : i32, i32
  }
  func.func @transform_4(%arg0: i32, %arg1: i32) -> (i32, i32) {
    %c0_i32 = arith.constant 0 : i32
    %c0_i32_0 = arith.constant 0 : i32
    %c0_i32_1 = arith.constant 0 : i32
    return %c0_i32, %c0_i32_0 : i32, i32
  }
  func.func @transform_5(%arg0: i32, %arg1: i32) -> (i32, i32) {
    %c0_i32 = arith.constant 0 : i32
    %c0_i32_0 = arith.constant 0 : i32
    return %arg0, %c0_i32 : i32, i32
  }
}

</mosaic_0001>

<llo_original>
// kernel: _apply.1
$region0: #{_apply.1}
  #allocation0 [shape = 'u32[]', space=smem, size = 0x4, offset = 0x4, fixed_abs, tag = 'smem constant byte address 0x4 - core index']
  #allocation1 [shape = 'u32[144,128]{1,0:T(1,128)}', space=vmem, size = 0x12000, scoped, tag = 'internal scratch']
  %s0 = inlined_call_operand.vmem [shape: f32[32,128], index: 0, kind: input, shape index: {}]
  %s1 = inlined_call_operand.hbm [shape: f32[128,128], index: 1, kind: input, shape index: {}]
  %s2 = inlined_call_operand.vmem [shape: f32[1,128], index: 2, kind: input, shape index: {}]
  %s3 = inlined_call_operand.hbm [shape: f32[128,128], index: 3, kind: input, shape index: {}]
  %s4 = inlined_call_operand.vmem [shape: f32[1,128], index: 4, kind: input, shape index: {}]
  %s5 = inlined_call_operand.hbm [shape: f32[32,128], index: 5, kind: output, shape index: {}]
  %s6 = sld [smem:[#allocation0]]
  $region50: #{_apply.1} parent=0
    _
  %s8 = ssub.s32 1, %s6
  %s9 = scalar_select 0, %s8, %s6
  $region1: #{_apply.1} parent=0
    #allocation2 [shape = 'u8[65536]{0}', space=vmem, size = 0x10000, scoped, tag = 'input window, operand 1, single buffered']
    #allocation3 [shape = 's32[1]{0}', space=sflag, size = 0x4, scoped, tag = 'scoped memory for _apply.1']
    #allocation4 [shape = 's32[1]{0}', space=sflag, size = 0x4, scoped, tag = 'scoped memory for _apply.1']
    #allocation5 [shape = 'u8[65536]{0}', space=vmem, size = 0x10000, scoped, tag = 'input window, operand 3, single buffered']
    #allocation6 [shape = 's32[1]{0}', space=sflag, size = 0x4, scoped, tag = 'scoped memory for _apply.1']
    #allocation7 [shape = 'u8[16384]{0}', space=vmem, size = 0x4000, scoped, tag = 'output window, operand 0, single buffered']
    %10 = vsyncpa [#allocation3], 0
    %11 = vsyncpa [#allocation6], 0
    %12 = vsyncpa [#allocation4], 0
    // Predicated region
    $region2: #{_apply.1} parent=1 // pred_check
      _
    $region3: #{_apply.1} parent=1 // pred_check_branch
      %14 = sbr.rel (0) target = $region5
    $region4: #{_apply.1} parent=1 // pred_region
      _
    $region5: #{_apply.1} parent=1 // pred_fallthru
      _
    // Predicated region
    $region6: #{_apply.1} parent=1 // pred_check
      _
    $region7: #{_apply.1} parent=1 // pred_check_branch
      %16 = sbr.rel (0) target = $region9
    $region8: #{_apply.1} parent=1 // pred_region
      %s18 = ssub.s32 2048, 2048
      %19 = vsyncadd [#allocation3], %s18
      %s20 = sshll.u32 [#allocation2], 4
      %s21 = int_to_ptr.vmem [resolvable:$true] %s20
      %26 = dma.hbm_to_vmem [thread:$0]  %s1, 2048, %s21, [#allocation3], 128, 128, 8
    $region9: #{_apply.1} parent=1 // pred_fallthru
      _
    // Predicated region
    $region10: #{_apply.1} parent=1 // pred_check
      _
    $region11: #{_apply.1} parent=1 // pred_check_branch
      %28 = sbr.rel (0) target = $region13
    $region12: #{_apply.1} parent=1 // pred_region
      _
    $region13: #{_apply.1} parent=1 // pred_fallthru
      _
    // Predicated region
    $region14: #{_apply.1} parent=1 // pred_check
      _
    $region15: #{_apply.1} parent=1 // pred_check_branch
      %30 = sbr.rel (0) target = $region17
    $region16: #{_apply.1} parent=1 // pred_region
      %s32 = ssub.s32 2048, 2048
      %33 = vsyncadd [#allocation6], %s32
      %s34 = sshll.u32 [#allocation5], 4
      %s35 = int_to_ptr.vmem [resolvable:$true] %s34
      %40 = dma.hbm_to_vmem [thread:$0]  %s3, 2048, %s35, [#allocation6], 128, 128, 8
    $region17: #{_apply.1} parent=1 // pred_fallthru
      _
    // Predicated region
    $region18: #{_apply.1} parent=1 // pred_check
      _
    $region19: #{_apply.1} parent=1 // pred_check_branch
      %42 = sbr.rel (0) target = $region21
    $region20: #{_apply.1} parent=1 // pred_region
      _
    $region21: #{_apply.1} parent=1 // pred_fallthru
      _
    // Predicated region
    $region22: #{_apply.1} parent=1 // pred_check
      _
    $region23: #{_apply.1} parent=1 // pred_check_branch
      %44 = sbr.rel (0) target = $region25
    $region24: #{_apply.1} parent=1 // pred_region
      %45 = dma.done [#allocation3], 2048
    $region25: #{_apply.1} parent=1 // pred_fallthru
      _
    // Predicated region
    $region26: #{_apply.1} parent=1 // pred_check
      _
    $region27: #{_apply.1} parent=1 // pred_check_branch
      %47 = sbr.rel (0) target = $region29
    $region28: #{_apply.1} parent=1 // pred_region
      %48 = dma.done [#allocation6], 2048
    $region29: #{_apply.1} parent=1 // pred_fallthru
      _
    %v49 = vld [vmem:[%s0] sm:$0xff]
    %v50 = vld [vmem:[%s0 + $0x8] sm:$0xff]
    %v51 = vld [vmem:[%s0 + $0x10] sm:$0xff]
    %v52 = vld [vmem:[%s0 + $0x18] sm:$0xff]
    %v53 = vld [vmem:[#allocation2] sm:$0xff]
    %v54 = vld [vmem:[#allocation2 + $0x8] sm:$0xff]
    %v55 = vld [vmem:[#allocation2 + $0x10] sm:$0xff]
    %v56 = vld [vmem:[#allocation2 + $0x18] sm:$0xff]
    %v57 = vld [vmem:[#allocation2 + $0x20] sm:$0xff]
    %v58 = vld [vmem:[#allocation2 + $0x28] sm:$0xff]
    %v59 = vld [vmem:[#allocation2 + $0x30] sm:$0xff]
    %v60 = vld [vmem:[#allocation2 + $0x38] sm:$0xff]
    %v61 = vld [vmem:[#allocation2 + $0x40] sm:$0xff]
    %v62 = vld [vmem:[#allocation2 + $0x48] sm:$0xff]
    %v63 = vld [vmem:[#allocation2 + $0x50] sm:$0xff]
    %v64 = vld [vmem:[#allocation2 + $0x58] sm:$0xff]
    %v65 = vld [vmem:[#allocation2 + $0x60] sm:$0xff]
    %v66 = vld [vmem:[#allocation2 + $0x68] sm:$0xff]
    %v67 = vld [vmem:[#allocation2 + $0x70] sm:$0xff]
    %v68 = vld [vmem:[#allocation2 + $0x78] sm:$0xff]
    %v69 = vld [vmem:[%s2] sm:$0x1]
    %v71 = vlaneseq
    %v72 = vshrl.u32 %v71, 7
    %v73 = vsub.s32 0, %v72
    %v74 = vrot.slane %v69, %v73
    %76 = vmatprep.subr.mxu0 0.0
    %77 = vmatpush1.msra.mxu0 %v68
    %78 = vmatprep.subr.mxu0 0.0
    %79 = vmatpush1.msra.mxu0 %v67
    %80 = vmatprep.subr.mxu0 0.0
    %81 = vmatpush1.msra.mxu0 %v66
    %82 = vmatprep.subr.mxu0 0.0
    %83 = vmatpush1.msra.mxu0 %v65
    %84 = vmatprep.subr.mxu0 0.0
    %85 = vmatpush1.msra.mxu0 %v64
    %86 = vmatprep.subr.mxu0 0.0
    %87 = vmatpush1.msra.mxu0 %v63
    %88 = vmatprep.subr.mxu0 0.0
    %89 = vmatpush1.msra.mxu0 %v62
    %90 = vmatprep.subr.mxu0 0.0
    %91 = vmatpush1.msra.mxu0 %v61
    %92 = vmatprep.subr.mxu0 0.0
    %93 = vmatpush1.msra.mxu0 %v60
    %94 = vmatprep.subr.mxu0 0.0
    %95 = vmatpush1.msra.mxu0 %v59
    %96 = vmatprep.subr.mxu0 0.0
    %97 = vmatpush1.msra.mxu0 %v58
    %98 = vmatprep.subr.mxu0 0.0
    %99 = vmatpush1.msra.mxu0 %v57
    %100 = vmatprep.subr.mxu0 0.0
    %101 = vmatpush1.msra.mxu0 %v56
    %102 = vmatprep.subr.mxu0 0.0
    %103 = vmatpush1.msra.mxu0 %v55
    %104 = vmatprep.subr.mxu0 0.0
    %105 = vmatpush1.msra.mxu0 %v54
    %106 = vmatprep.subr.mxu0 0.0
    %107 = vmatpush1.msra.mxu0 %v53
    %108 = vmatprep.subr.mxu0 0.0
    %109 = vmatpush2.msra.mxu0 0.0
    %110 = vmatprep.subr.mxu0 0.0
    %111 = vmatpush2.msra.mxu0 0.0
    %112 = vmatprep.subr.mxu0 0.0
    %113 = vmatpush2.msra.mxu0 0.0
    %114 = vmatprep.subr.mxu0 0.0
    %115 = vmatpush2.msra.mxu0 0.0
    %116 = vmatprep.subr.mxu0 0.0
    %117 = vmatpush2.msra.mxu0 0.0
    %118 = vmatprep.subr.mxu0 0.0
    %119 = vmatpush2.msra.mxu0 0.0
    %120 = vmatprep.subr.mxu0 0.0
    %121 = vmatpush2.msra.mxu0 0.0
    %122 = vmatprep.subr.mxu0 0.0
    %123 = vmatpush2.msra.mxu0 0.0
    %124 = vmatprep.subr.mxu0 0.0
    %125 = vmatpush2.msra.mxu0 0.0
    %126 = vmatprep.subr.mxu0 0.0
    %127 = vmatpush2.msra.mxu0 0.0
    %128 = vmatprep.subr.mxu0 0.0
    %129 = vmatpush2.msra.mxu0 0.0
    %130 = vmatprep.subr.mxu0 0.0
    %131 = vmatpush2.msra.mxu0 0.0
    %132 = vmatprep.subr.mxu0 0.0
    %133 = vmatpush2.msra.mxu0 0.0
    %134 = vmatprep.subr.mxu0 0.0
    %135 = vmatpush2.msra.mxu0 0.0
    %136 = vmatprep.subr.mxu0 0.0
    %137 = vmatpush2.msra.mxu0 0.0
    %138 = vmatprep.subr.mxu0 0.0
    %139 = vmatpush2.msra.mxu0 0.0
    %140 = vmatprep.mubr.f32.mxu0 0.0
    %141 = vmatmul.mubr.f32.gmra.mxu0 %v49
    %v142 = vpop.f32.mrf.mxu0
    %v143 = vadd.f32 %v74, %v142
    %v144 = vpop.f32.mrf.mxu0
    %145 = vmatprep.mubr.f32.mxu0 0.0
    %146 = vmatmul.mubr.f32.gmra.mxu0 %v50
    %v147 = vpop.f32.mrf.mxu0
    %v148 = vadd.f32 %v74, %v147
    %v149 = vpop.f32.mrf.mxu0
    %150 = vmatprep.mubr.f32.mxu0 0.0
    %151 = vmatmul.mubr.f32.gmra.mxu0 %v51
    %v152 = vpop.f32.mrf.mxu0
    %v153 = vadd.f32 %v74, %v152
    %v154 = vpop.f32.mrf.mxu0
    %155 = vmatprep.mubr.f32.mxu0 0.0
    %156 = vmatmul.mubr.f32.gmra.mxu0 %v52
    %v157 = vpop.f32.mrf.mxu0
    %v158 = vadd.f32 %v74, %v157
    %v159 = vpop.f32.mrf.mxu0
    %160 = vdwg.mxu0
    %v161 = vmax.f32 %v143, 0.0
    %v162 = vmax.f32 %v148, 0.0
    %v163 = vmax.f32 %v153, 0.0
    %v164 = vmax.f32 %v158, 0.0
    %v165 = vld [vmem:[#allocation5] sm:$0xff]
    %v166 = vld [vmem:[#allocation5 + $0x8] sm:$0xff]
    %v167 = vld [vmem:[#allocation5 + $0x10] sm:$0xff]
    %v168 = vld [vmem:[#allocation5 + $0x18] sm:$0xff]
    %v169 = vld [vmem:[#allocation5 + $0x20] sm:$0xff]
    %v170 = vld [vmem:[#allocation5 + $0x28] sm:$0xff]
    %v171 = vld [vmem:[#allocation5 + $0x30] sm:$0xff]
    %v172 = vld [vmem:[#allocation5 + $0x38] sm:$0xff]
    %v173 = vld [vmem:[#allocation5 + $0x40] sm:$0xff]
    %v174 = vld [vmem:[#allocation5 + $0x48] sm:$0xff]
    %v175 = vld [vmem:[#allocation5 + $0x50] sm:$0xff]
    %v176 = vld [vmem:[#allocation5 + $0x58] sm:$0xff]
    %v177 = vld [vmem:[#allocation5 + $0x60] sm:$0xff]
    %v178 = vld [vmem:[#allocation5 + $0x68] sm:$0xff]
    %v179 = vld [vmem:[#allocation5 + $0x70] sm:$0xff]
    %v180 = vld [vmem:[#allocation5 + $0x78] sm:$0xff]
    %181 = vmatprep.subr.mxu0 0.0
    %182 = vmatpush1.msra.mxu0 %v180
    %183 = vmatprep.subr.mxu0 0.0
    %184 = vmatpush1.msra.mxu0 %v179
    %185 = vmatprep.subr.mxu0 0.0
    %186 = vmatpush1.msra.mxu0 %v178
    %187 = vmatprep.subr.mxu0 0.0
    %188 = vmatpush1.msra.mxu0 %v177
    %189 = vmatprep.subr.mxu0 0.0
    %190 = vmatpush1.msra.mxu0 %v176
    %191 = vmatprep.subr.mxu0 0.0
    %192 = vmatpush1.msra.mxu0 %v175
    %193 = vmatprep.subr.mxu0 0.0
    %194 = vmatpush1.msra.mxu0 %v174
    %195 = vmatprep.subr.mxu0 0.0
    %196 = vmatpush1.msra.mxu0 %v173
    %197 = vmatprep.subr.mxu0 0.0
    %198 = vmatpush1.msra.mxu0 %v172
    %199 = vmatprep.subr.mxu0 0.0
    %200 = vmatpush1.msra.mxu0 %v171
    %201 = vmatprep.subr.mxu0 0.0
    %202 = vmatpush1.msra.mxu0 %v170
    %203 = vmatprep.subr.mxu0 0.0
    %204 = vmatpush1.msra.mxu0 %v169
    %205 = vmatprep.subr.mxu0 0.0
    %206 = vmatpush1.msra.mxu0 %v168
    %207 = vmatprep.subr.mxu0 0.0
    %208 = vmatpush1.msra.mxu0 %v167
    %209 = vmatprep.subr.mxu0 0.0
    %210 = vmatpush1.msra.mxu0 %v166
    %211 = vmatprep.subr.mxu0 0.0
    %212 = vmatpush1.msra.mxu0 %v165
    %213 = vmatprep.subr.mxu0 0.0
    %214 = vmatpush2.msra.mxu0 0.0
    %215 = vmatprep.subr.mxu0 0.0
    %216 = vmatpush2.msra.mxu0 0.0
    %217 = vmatprep.subr.mxu0 0.0
    %218 = vmatpush2.msra.mxu0 0.0
    %219 = vmatprep.subr.mxu0 0.0
    %220 = vmatpush2.msra.mxu0 0.0
    %221 = vmatprep.subr.mxu0 0.0
    %222 = vmatpush2.msra.mxu0 0.0
    %223 = vmatprep.subr.mxu0 0.0
    %224 = vmatpush2.msra.mxu0 0.0
    %225 = vmatprep.subr.mxu0 0.0
    %226 = vmatpush2.msra.mxu0 0.0
    %227 = vmatprep.subr.mxu0 0.0
    %228 = vmatpush2.msra.mxu0 0.0
    %229 = vmatprep.subr.mxu0 0.0
    %230 = vmatpush2.msra.mxu0 0.0
    %231 = vmatprep.subr.mxu0 0.0
    %232 = vmatpush2.msra.mxu0 0.0
    %233 = vmatprep.subr.mxu0 0.0
    %234 = vmatpush2.msra.mxu0 0.0
    %235 = vmatprep.subr.mxu0 0.0
    %236 = vmatpush2.msra.mxu0 0.0
    %237 = vmatprep.subr.mxu0 0.0
    %238 = vmatpush2.msra.mxu0 0.0
    %239 = vmatprep.subr.mxu0 0.0
    %240 = vmatpush2.msra.mxu0 0.0
    %241 = vmatprep.subr.mxu0 0.0
    %242 = vmatpush2.msra.mxu0 0.0
    %243 = vmatprep.subr.mxu0 0.0
    %244 = vmatpush2.msra.mxu0 0.0
    %245 = vmatprep.mubr.f32.mxu0 0.0
    %246 = vmatmul.mubr.f32.gmra.mxu0 %v161
    %v247 = vpop.f32.mrf.mxu0
    %v248 = vadd.f32 0.0, %v247
    %v249 = vpop.f32.mrf.mxu0
    %250 = vmatprep.mubr.f32.mxu0 0.0
    %251 = vmatmul.mubr.f32.gmra.mxu0 %v162
    %v252 = vpop.f32.mrf.mxu0
    %v253 = vadd.f32 0.0, %v252
    %v254 = vpop.f32.mrf.mxu0
    %255 = vmatprep.mubr.f32.mxu0 0.0
    %256 = vmatmul.mubr.f32.gmra.mxu0 %v163
    %v257 = vpop.f32.mrf.mxu0
    %v258 = vadd.f32 0.0, %v257
    %v259 = vpop.f32.mrf.mxu0
    %260 = vmatprep.mubr.f32.mxu0 0.0
    %261 = vmatmul.mubr.f32.gmra.mxu0 %v164
    %v262 = vpop.f32.mrf.mxu0
    %v263 = vadd.f32 0.0, %v262
    %v264 = vpop.f32.mrf.mxu0
    %265 = vdwg.mxu0
    %p266 = scmp.eq.s32.totalorder 0, 0
    // Predicated region
    $region30: #{_apply.1} parent=1 // pred_check
      %p267 = pneg %p266
    $region31: #{_apply.1} parent=1 // pred_check_branch
      %269 = sbr.rel (%p267) target = $region33
    $region32: #{_apply.1} parent=1 // pred_region
      %270 = vst [vmem:[#allocation7] sm:$0xff] %v248
      %271 = vst [vmem:[#allocation7 + $0x8] sm:$0xff] %v253
      %272 = vst [vmem:[#allocation7 + $0x10] sm:$0xff] %v258
      %273 = vst [vmem:[#allocation7 + $0x18] sm:$0xff] %v263
    $region33: #{_apply.1} parent=1 // pred_fallthru
      _
    %p274 = scmp.ne.s32.totalorder 0, 0
    // Predicated region
    $region34: #{_apply.1} parent=1 // pred_check
      %p275 = pneg %p274
    $region35: #{_apply.1} parent=1 // pred_check_branch
      %277 = sbr.rel (%p275) target = $region37
    $region36: #{_apply.1} parent=1 // pred_region
      %v278 = vld [vmem:[#allocation7] sm:$0xff]
      %v279 = vld [vmem:[#allocation7 + $0x8] sm:$0xff]
      %v280 = vld [vmem:[#allocation7 + $0x10] sm:$0xff]
      %v281 = vld [vmem:[#allocation7 + $0x18] sm:$0xff]
      %v282 = vadd.f32 %v278, %v248
      %v283 = vadd.f32 %v279, %v253
      %v284 = vadd.f32 %v280, %v258
      %v285 = vadd.f32 %v281, %v263
      %286 = vst [vmem:[#allocation7] sm:$0xff] %v282
      %287 = vst [vmem:[#allocation7 + $0x8] sm:$0xff] %v283
      %288 = vst [vmem:[#allocation7 + $0x10] sm:$0xff] %v284
      %289 = vst [vmem:[#allocation7 + $0x18] sm:$0xff] %v285
    $region37: #{_apply.1} parent=1 // pred_fallthru
      _
    // Predicated region
    $region38: #{_apply.1} parent=1 // pred_check
      %p290 = pneg %p266
    $region39: #{_apply.1} parent=1 // pred_check_branch
      %292 = sbr.rel (%p290) target = $region41
    $region40: #{_apply.1} parent=1 // pred_region
      %v293 = vld [vmem:[#allocation7] sm:$0xff]
      %v294 = vld [vmem:[#allocation7 + $0x8] sm:$0xff]
      %v295 = vld [vmem:[#allocation7 + $0x10] sm:$0xff]
      %v296 = vld [vmem:[#allocation7 + $0x18] sm:$0xff]
      %v297 = vld [vmem:[%s4] sm:$0x1]
      %v299 = vlaneseq
      %v300 = vshrl.u32 %v299, 7
      %v301 = vsub.s32 0, %v300
      %v302 = vrot.slane %v297, %v301
      %v304 = vadd.f32 %v293, %v302
      %v305 = vadd.f32 %v294, %v302
      %v306 = vadd.f32 %v295, %v302
      %v307 = vadd.f32 %v296, %v302
      %308 = vst [vmem:[#allocation7] sm:$0xff] %v304
      %309 = vst [vmem:[#allocation7 + $0x8] sm:$0xff] %v305
      %310 = vst [vmem:[#allocation7 + $0x10] sm:$0xff] %v306
      %311 = vst [vmem:[#allocation7 + $0x18] sm:$0xff] %v307
    $region41: #{_apply.1} parent=1 // pred_fallthru
      _
    // Predicated region
    $region42: #{_apply.1} parent=1 // pred_check
      _
    $region43: #{_apply.1} parent=1 // pred_check_branch
      %313 = sbr.rel (0) target = $region45
    $region44: #{_apply.1} parent=1 // pred_region
      %s315 = ssub.s32 512, 512
      %316 = vsyncadd [#allocation4], %s315
      %s317 = sshll.u32 [#allocation7], 4
      %s318 = int_to_ptr.vmem [resolvable:$true] %s317
      %323 = dma.vmem_to_hbm [thread:$0]  %s318, 512, %s5, [#allocation4], 128, 128, 8
    $region45: #{_apply.1} parent=1 // pred_fallthru
      _
    // Predicated region
    $region46: #{_apply.1} parent=1 // pred_check
      _
    $region47: #{_apply.1} parent=1 // pred_check_branch
      %325 = sbr.rel (0) target = $region49
    $region48: #{_apply.1} parent=1 // pred_region
      %326 = dma.done [#allocation4], 512
    $region49: #{_apply.1} parent=1 // pred_fallthru
      _
    %327 = vsyncpa [#allocation3], 1
    %328 = vsyncpa [#allocation6], 1
    %329 = vsyncpa [#allocation4], 1

</llo_original>
